<compile_context>
chip_gen: v7x
topology: tpu7x:2x2x1
jax: 0.10.0
libtpu: 0.0.40
codegen_flags: <defaults>
</compile_context>

<pallas_src>
import jax
import jax.numpy as jnp
from jax.experimental import pallas as pl
from jax.experimental.pallas import tpu as pltpu

IN_FEATURES = 28 * 28   # 784
OUT_FEATURES = 5
TAU = 2.0
V_THRESHOLD = 0.8

M_PAD = 8      # 5 output neurons -> 8 sublanes (one-time weight row pad)
N_LANE = 128   # lane-dense output tile width (unmasked stores)


def _vpr_kernel(x_ref, w_ref, cur_ref):
    """x_ref: (1, 784) flattened input; w_ref: (8, 784) row-padded weight;
    cur_ref: (8, 128) lane-dense output, valid data in column 0, rows 0..4."""
    x = x_ref[...]                                         # (1, 784)
    w = w_ref[...]                                         # (8, 784)
    # i = W @ x as a VPU multiply + XLU lane reduction (no MXU).
    cur = jnp.sum(w * x, axis=-1, keepdims=True)           # (8, 1) f32
    cur_ref[...] = jnp.broadcast_to(cur, (M_PAD, N_LANE))  # single full-width store


def prepare_weight(weight):
    """One-time (init-path) prep: (5, 784) -> (8, 784), zero rows 5..7."""
    w = weight.astype(jnp.float32)
    return jnp.pad(w, ((0, M_PAD - OUT_FEATURES), (0, 0)))


@jax.jit
def vpr_forward(x, w_pad):
    """Module-faithful single forward: x flattens to 784 elements.
    Returns (spikes (5,), pre-threshold current i = x_flat @ W^T (5,))."""
    x_flat = jnp.reshape(x, (1, IN_FEATURES)).astype(jnp.float32)

    cur_tile = pl.pallas_call(
        _vpr_kernel,
        out_shape=jax.ShapeDtypeStruct((M_PAD, N_LANE), jnp.float32),
        in_specs=[
            pl.BlockSpec(memory_space=pltpu.MemorySpace.VMEM),
            pl.BlockSpec(memory_space=pltpu.MemorySpace.VMEM),
        ],
        out_specs=pl.BlockSpec(memory_space=pltpu.MemorySpace.VMEM),
    )(x_flat, w_pad)

    cur = cur_tile[:OUT_FEATURES, 0]                             # (5,)
    spikes = (cur / TAU >= V_THRESHOLD).astype(jnp.float32)      # LIF charge + fire
    return spikes, cur


@jax.jit
def vpr_forward_batched(xb, w_pad):
    """Throughput path: leading dim = batch of independent samples, each sample
    flattened to 784 (equivalent to calling the module once per sample).
    Weight is DMA'd once and stays VMEM-resident across the grid; the batch
    axis is 'parallel' so v7x shards it across both TensorCores."""
    b = xb.shape[0]
    xb_flat = jnp.reshape(xb, (b, 1, IN_FEATURES)).astype(jnp.float32)

    cur_tiles = pl.pallas_call(
        _vpr_kernel,
        out_shape=jax.ShapeDtypeStruct((b, M_PAD, N_LANE), jnp.float32),
        grid=(b,),
        in_specs=[
            pl.BlockSpec((None, 1, IN_FEATURES), lambda i: (i, 0, 0)),
            pl.BlockSpec((M_PAD, IN_FEATURES), lambda i: (0, 0)),
        ],
        out_specs=pl.BlockSpec((None, M_PAD, N_LANE), lambda i: (i, 0, 0)),
        compiler_params=pltpu.CompilerParams(
            dimension_semantics=("parallel",)),
    )(xb_flat, w_pad)

    cur = cur_tiles[:, :OUT_FEATURES, 0]                         # (B, 5)
    spikes = (cur / TAU >= V_THRESHOLD).astype(jnp.float32)
    return spikes, cur


if __name__ == "__main__":
    key = jax.random.PRNGKey(0)
    k_x, k_w, k_b = jax.random.split(key, 3)

    # input consistent with the module: flattens to 784 elements
    x = jax.random.normal(k_x, (1, 28, 28), dtype=jnp.float32)

    # deterministic Linear weight init (PyTorch default: U(-1/sqrt(fan_in), 1/sqrt(fan_in)))
    bound = 1.0 / jnp.sqrt(jnp.float32(IN_FEATURES))
    weight = jax.random.uniform(
        k_w, (OUT_FEATURES, IN_FEATURES), dtype=jnp.float32,
        minval=-bound, maxval=bound,
    )

    # one-time weight prep (outside the per-call path)
    w_pad = prepare_weight(weight)

    # ---- single-sample (module-faithful) path ----
    spikes, cur = vpr_forward(x, w_pad)
    jax.block_until_ready((spikes, cur))

    x_flat = jnp.reshape(x, (-1,)).astype(jnp.float32)
    ref_cur = jnp.sum(weight * x_flat[None, :], axis=-1)                 # (5,)
    ref_spike = (ref_cur / TAU >= V_THRESHOLD).astype(jnp.float32)       # (5,)

    assert spikes.shape == (OUT_FEATURES,)
    assert jnp.allclose(cur, ref_cur, rtol=1e-5, atol=1e-5), (cur, ref_cur)
    # compare spikes only where the reference current is safely away from the
    # threshold (ULP-order accumulation differences can flip borderline cases)
    safe = jnp.abs(ref_cur / TAU - V_THRESHOLD) > 1e-5
    assert bool(jnp.all(jnp.where(safe, spikes == ref_spike, True))), (spikes, ref_spike)

    # ---- batched path (amortizes per-call overhead; weight VMEM-resident) ----
    B = 4
    xb = jax.random.normal(k_b, (B, 28, 28), dtype=jnp.float32)
    spikes_b, cur_b = vpr_forward_batched(xb, w_pad)
    jax.block_until_ready((spikes_b, cur_b))

    ref_cur_b = jnp.einsum('of,bf->bo', weight, jnp.reshape(xb, (B, IN_FEATURES)))
    ref_spike_b = (ref_cur_b / TAU >= V_THRESHOLD).astype(jnp.float32)
    assert spikes_b.shape == (B, OUT_FEATURES)
    assert jnp.allclose(cur_b, ref_cur_b, rtol=1e-5, atol=1e-5), (cur_b, ref_cur_b)
    safe_b = jnp.abs(ref_cur_b / TAU - V_THRESHOLD) > 1e-5
    assert bool(jnp.all(jnp.where(safe_b, spikes_b == ref_spike_b, True)))

    print("KERNEL_OK")
</pallas_src>

<mosaic_0001>
module attributes {stable_mosaic.version = 11 : i64} {
  func.func @_vpr_kernel(%arg0: memref<1x784xf32, #tpu.memory_space<vmem>>, %arg1: memref<8x784xf32, #tpu.memory_space<vmem>>, %arg2: memref<8x128xf32, #tpu.memory_space<vmem>>) attributes {dimension_semantics = [], scalar_prefetch = 0 : i64, scratch_operands = 0 : i64, tpu.core_type = #tpu.core_type<tc>} {
    %c0 = arith.constant 0 : index
    %c0_0 = arith.constant 0 : index
    %0 = vector.load %arg0[%c0, %c0_0] : memref<1x784xf32, #tpu.memory_space<vmem>>, vector<1x784xf32>
    %c0_1 = arith.constant 0 : index
    %c0_2 = arith.constant 0 : index
    %1 = vector.load %arg1[%c0_1, %c0_2] : memref<8x784xf32, #tpu.memory_space<vmem>>, vector<8x784xf32>
    %2 = vector.broadcast %0 : vector<1x784xf32> to vector<8x784xf32>
    %3 = arith.mulf %1, %2 : vector<8x784xf32>
    %cst = arith.constant dense<0.000000e+00> : vector<8xf32>
    %4 = vector.multi_reduction <add>, %3, %cst [1] : vector<8x784xf32> to vector<8xf32>
    %5 = vector.shape_cast %4 : vector<8xf32> to vector<8x1xf32>
    %6 = vector.shape_cast %5 : vector<8x1xf32> to vector<8x1xf32>
    %7 = vector.broadcast %6 : vector<8x1xf32> to vector<8x128xf32>
    %c0_3 = arith.constant 0 : index
    %c0_4 = arith.constant 0 : index
    %8 = vector.load %arg2[%c0_3, %c0_4] : memref<8x128xf32, #tpu.memory_space<vmem>>, vector<8x128xf32>
    tpu.vector_store %arg2[%c0_3, %c0_4], %7 {strides = array<i32>} : memref<8x128xf32, #tpu.memory_space<vmem>>, vector<8x128xf32>,
    return
  }
}

</mosaic_0001>

<llo_original>
// kernel: vpr_forward.1
$region0: #{vpr_forward.1}
  #allocation0 [shape = 'u32[]', space=smem, size = 0x4, offset = 0x4, fixed_abs, tag = 'smem constant byte address 0x4 - core index']
  #allocation1 [shape = 'u32[144,128]{1,0:T(1,128)}', space=vmem, size = 0x12000, scoped, tag = 'internal scratch']
  %s0 = inlined_call_operand.vmem [shape: f32[1,784], index: 0, kind: input, shape index: {}]
  %s1 = inlined_call_operand.vmem [shape: f32[8,784], index: 1, kind: input, shape index: {}]
  %s2 = inlined_call_operand.vmem [shape: f32[8,128], index: 2, kind: output, shape index: {}]
  %s3 = sld [smem:[#allocation0]]
  $region18: #{vpr_forward.1} parent=0
    _
  %s5 = ssub.s32 1, %s3
  %s6 = scalar_select 0, %s5, %s3
  // Predicated region
  $region2: #{vpr_forward.1} parent=0 // pred_check
    _
  $region3: #{vpr_forward.1} parent=0 // pred_check_branch
    %8 = sbr.rel (0) target = $region5
  $region4: #{vpr_forward.1} parent=0 // pred_region
    _
  $region5: #{vpr_forward.1} parent=0 // pred_fallthru
    _
  // Predicated region
  $region6: #{vpr_forward.1} parent=0 // pred_check
    _
  $region7: #{vpr_forward.1} parent=0 // pred_check_branch
    %10 = sbr.rel (0) target = $region9
  $region8: #{vpr_forward.1} parent=0 // pred_region
    _
  $region9: #{vpr_forward.1} parent=0 // pred_fallthru
    _
  %v11 = vld [vmem:[%s0] sm:$0x7f]
  %v12 = vld [vmem:[%s1] sm:$0xff]
  %v13 = vld [vmem:[%s1 + $0x8] sm:$0xff]
  %v14 = vld [vmem:[%s1 + $0x10] sm:$0xff]
  %v15 = vld [vmem:[%s1 + $0x18] sm:$0xff]
  %v16 = vld [vmem:[%s1 + $0x20] sm:$0xff]
  %v17 = vld [vmem:[%s1 + $0x28] sm:$0xff]
  %v18 = vld [vmem:[%s1 + $0x30] sm:$0xff]
  %v20 = vlaneseq
  %v21 = vshrl.u32 %v20, 7
  %v22 = vsub.s32 0, %v21
  %v23 = vrot.slane %v11, %v22
  %v24 = vlaneseq
  %v25 = vshrl.u32 %v24, 7
  %v26 = vsub.s32 1, %v25
  %v27 = vrot.slane %v11, %v26
  %v28 = vlaneseq
  %v29 = vshrl.u32 %v28, 7
  %v30 = vsub.s32 2, %v29
  %v31 = vrot.slane %v11, %v30
  %v32 = vlaneseq
  %v33 = vshrl.u32 %v32, 7
  %v34 = vsub.s32 3, %v33
  %v35 = vrot.slane %v11, %v34
  %v36 = vlaneseq
  %v37 = vshrl.u32 %v36, 7
  %v38 = vsub.s32 4, %v37
  %v39 = vrot.slane %v11, %v38
  %v40 = vlaneseq
  %v41 = vshrl.u32 %v40, 7
  %v42 = vsub.s32 5, %v41
  %v43 = vrot.slane %v11, %v42
  %v44 = vlaneseq
  %v45 = vshrl.u32 %v44, 7
  %v46 = vsub.s32 6, %v45
  %v47 = vrot.slane %v11, %v46
  %v55 = vmul.f32 %v12, %v23
  %v56 = vmul.f32 %v13, %v27
  %v57 = vmul.f32 %v14, %v31
  %v58 = vmul.f32 %v15, %v35
  %v59 = vmul.f32 %v16, %v39
  %v60 = vmul.f32 %v17, %v43
  %v61 = vmul.f32 %v18, %v47
  %v62 = vadd.f32 %v55, %v56
  %v63 = vadd.f32 %v62, %v57
  %v64 = vadd.f32 %v63, %v58
  %v65 = vadd.f32 %v64, %v59
  %v66 = vadd.f32 %v65, %v60
  %vm67 = vcmask 130048
  %v68 = vsel %vm67, %v61, 0.0
  %v69 = vadd.f32 %v66, %v68
  %70 = vadd.xlane.f32.xlu0 %v69
  %v71 = vpop.xlane.xlu0 %70
  %72 = vst [vmem:[%s2] sm:$0xff] %v71
  // Predicated region
  $region10: #{vpr_forward.1} parent=0 // pred_check
    _
  $region11: #{vpr_forward.1} parent=0 // pred_check_branch
    %74 = sbr.rel (0) target = $region13
  $region12: #{vpr_forward.1} parent=0 // pred_region
    _
  $region13: #{vpr_forward.1} parent=0 // pred_fallthru
    _
  // Predicated region
  $region14: #{vpr_forward.1} parent=0 // pred_check
    _
  $region15: #{vpr_forward.1} parent=0 // pred_check_branch
    %76 = sbr.rel (0) target = $region17
  $region16: #{vpr_forward.1} parent=0 // pred_region
    _
  $region17: #{vpr_forward.1} parent=0 // pred_fallthru
    _

</llo_original>
